<compile_context>
chip_gen: v6e
topology: v6e:2x2x1
jax: 0.10.0
libtpu: 0.0.40
codegen_flags: <defaults>
</compile_context>

<pallas_src>
import functools

import jax
import jax.numpy as jnp
from jax import lax
from jax.experimental import pallas as pl
from jax.experimental.pallas import tpu as pltpu

LATENT_SIZE = 256   # matches the PyTorch module default
_CHUNK = 2048       # in-tile compute chunk: (1, 2048) f32 acc = 16 vregs


def _chunk_bounds(tb, chunk):
    bounds = []
    s = 0
    while s < tb:
        sz = min(chunk, tb - s)
        bounds.append((s, sz))
        s += sz
    return tuple(bounds)


def _classifier_kernel(x_ref, w_ref, b_ref, o_ref, *, chunks):
    # x_ref: (TB, D) VMEM; w_ref: (1, D) VMEM; b_ref: (1,) SMEM; o_ref: (1, TB) VMEM
    w = w_ref[...]
    b = b_ref[0]
    # Static (trace-time) chunk loop keeps the accumulator small while the DMA
    # block stays one large (TB, D) stream per grid step.
    for s, sz in chunks:
        acc = lax.dot_general(
            w,                               # (1, D)
            x_ref[s:s + sz, :],              # (sz, D)
            dimension_numbers=(((1,), (1,)), ((), ())),
            preferred_element_type=jnp.float32,
        )                                    # -> (1, sz), lane-dense
        o_ref[:, s:s + sz] = (acc + b).astype(o_ref.dtype)


def _select_tile_config():
    """Generation-aware batch tile + scoped-VMEM limit."""
    try:
        kind = jax.devices()[0].device_kind.lower()
    except Exception:
        kind = ""
    if ("v6" in kind) or ("v7" in kind):
        # Faster HBM (1.4-3.2 TB/s): 8 MiB tiles amortize the ~0.35 us/step
        # overhead to >90% of roofline; raise scoped VMEM for headroom
        # (double-buffered x ~16 MiB; well under 64 MiB v7x / 128 MiB v6e).
        return 8192, 40 << 20
    # v5e and older: 4 MiB tiles are already ~93% of the ~0.82 TB/s roofline and
    # fit the 16 MiB scoped-VMEM default without an override.
    return 4096, None


def classifier_forward(x, weight, bias, tile_rows=None):
    """y = x @ weight.T + bias  (PyTorch nn.Linear(D, 1) forward).

    x: (B, D) float32; weight: (1, D) (PyTorch layout); bias: (1,). Returns (B, 1).
    `tile_rows` overrides the batch tile (testing / tuning only).
    """
    B, D = x.shape

    if tile_rows is None:
        tb_big, vmem_limit = _select_tile_config()
    else:
        tb_big, vmem_limit = int(tile_rows), None

    if B <= tb_big:
        # Single-tile path: block == full array, so no (8,128) divisibility
        # requirement and no padding anywhere.
        tb = B
        num_tiles = 1
        b_out = B
    else:
        # Multi-tile path: x is NOT padded (ragged last block handled by Pallas);
        # only the tiny output is rounded up so output stores stay unmasked.
        tb = tb_big
        num_tiles = pl.cdiv(B, tb)
        b_out = num_tiles * tb

    kernel = functools.partial(_classifier_kernel, chunks=_chunk_bounds(tb, _CHUNK))

    cost = pl.CostEstimate(
        flops=2 * B * D,
        transcendentals=0,
        bytes_accessed=B * D * 4 + B * 4 + D * 4,
    )

    out = pl.pallas_call(
        kernel,
        out_shape=jax.ShapeDtypeStruct((1, b_out), x.dtype),
        grid_spec=pltpu.PrefetchScalarGridSpec(
            num_scalar_prefetch=0,
            grid=(num_tiles,),
            in_specs=[
                pl.BlockSpec((tb, D), lambda i: (i, 0)),              # streamed x tiles
                pl.BlockSpec((1, D), lambda i: (0, 0)),               # resident weight
                pl.BlockSpec(memory_space=pltpu.MemorySpace.SMEM),    # bias scalar
            ],
            out_specs=pl.BlockSpec((1, tb), lambda i: (0, i)),        # lane-dense output
        ),
        compiler_params=pltpu.CompilerParams(
            dimension_semantics=("parallel",),   # shard batch tiles across TCs (v7x)
            vmem_limit_bytes=vmem_limit,
        ),
        cost_estimate=cost,
    )(x, weight, bias)

    # Back to the module's (B, 1) output layout; drop any output-lane padding.
    return out[0, :B].reshape(B, 1)


if __name__ == "__main__":
    key = jax.random.PRNGKey(0)
    kx, kw, kb = jax.random.split(key, 3)

    batch = 8
    x = jax.random.normal(kx, (batch, LATENT_SIZE), dtype=jnp.float32)

    # Deterministic parameter init (mimics Linear's uniform(-1/sqrt(D), 1/sqrt(D))).
    bound = 1.0 / (LATENT_SIZE ** 0.5)
    weight = jax.random.uniform(kw, (1, LATENT_SIZE), jnp.float32, -bound, bound)
    bias = jax.random.uniform(kb, (1,), jnp.float32, -bound, bound)

    out = classifier_forward(x, weight, bias)
    out = jax.block_until_ready(out)
    ref = x @ weight.T + bias
    assert out.shape == (batch, 1)
    assert jnp.allclose(out, ref, atol=1e-5, rtol=1e-5)

    # Exercise the multi-tile, ragged-last-block (no-pad) path with a forced
    # small tile: 300 rows over 128-row tiles -> 3 tiles, last one partial.
    batch2 = 300
    x2 = jax.random.normal(kx, (batch2, LATENT_SIZE), dtype=jnp.float32)
    out2 = jax.block_until_ready(classifier_forward(x2, weight, bias, tile_rows=128))
    ref2 = x2 @ weight.T + bias
    assert out2.shape == (batch2, 1)
    assert jnp.allclose(out2, ref2, atol=1e-5, rtol=1e-5)

    print("KERNEL_OK")
</pallas_src>

<mosaic_0001>
module attributes {stable_mosaic.version = 11 : i64} {
  func.func @_classifier_kernel(%arg0: i32, %arg1: memref<8x256xf32, #tpu.memory_space<vmem>>, %arg2: memref<1x256xf32, #tpu.memory_space<vmem>>, %arg3: memref<1xf32, #tpu.memory_space<smem>>, %arg4: memref<1x8xf32, #tpu.memory_space<vmem>>) attributes {dimension_semantics = [#tpu.dimension_semantics<parallel>], iteration_bounds = array<i64: 1>, scalar_prefetch = 0 : i64, scratch_operands = 0 : i64, tpu.core_type = #tpu.core_type<tc>, window_params = [{transform_indices = @transform_0, window_bounds = array<i64: 8, 256>}, {pipeline_mode = #tpu.pipeline_mode<synchronous>, transform_indices = @transform_1, window_bounds = array<i64: 1, 256>}, {transform_indices = @transform_2, window_bounds = array<i64: 1>}, {transform_indices = @transform_3, window_bounds = array<i64: 1, 8>}]} {
    %c0 = arith.constant 0 : index
    %c0_0 = arith.constant 0 : index
    %0 = vector.load %arg2[%c0, %c0_0] : memref<1x256xf32, #tpu.memory_space<vmem>>, vector<1x256xf32>
    %c0_1 = arith.constant 0 : index
    %1 = memref.load %arg3[%c0_1] : memref<1xf32, #tpu.memory_space<smem>>
    %c0_2 = arith.constant 0 : index
    %c0_3 = arith.constant 0 : index
    %2 = vector.load %arg1[%c0_2, %c0_3] : memref<8x256xf32, #tpu.memory_space<vmem>>, vector<8x256xf32>
    %cst = arith.constant dense<0.000000e+00> : vector<1x8xf32>
    %3 = tpu.matmul %0, %2, %cst {dimension_numbers = #tpu.dot_dimension_numbers<[1], [1], [0], [0], [0, 0, 1, 0], [], []>} : vector<1x256xf32>, vector<8x256xf32>, vector<1x8xf32> -> vector<1x8xf32>
    %4 = vector.broadcast %1 : f32 to vector<1x8xf32>
    %5 = arith.addf %3, %4 : vector<1x8xf32>
    %c0_4 = arith.constant 0 : index
    %c0_5 = arith.constant 0 : index
    %6 = vector.load %arg4[%c0_4, %c0_5] : memref<1x8xf32, #tpu.memory_space<vmem>>, vector<1x8xf32>
    tpu.vector_store %arg4[%c0_4, %c0_5], %5 {strides = array<i32>} : memref<1x8xf32, #tpu.memory_space<vmem>>, vector<1x8xf32>,
    return
  }
  func.func @transform_0(%arg0: i32) -> (i32, i32) {
    %c0_i32 = arith.constant 0 : i32
    %c0_i32_0 = arith.constant 0 : i32
    return %arg0, %c0_i32 : i32, i32
  }
  func.func @transform_1(%arg0: i32) -> (i32, i32) {
    %c0_i32 = arith.constant 0 : i32
    %c0_i32_0 = arith.constant 0 : i32
    %c0_i32_1 = arith.constant 0 : i32
    return %c0_i32, %c0_i32_0 : i32, i32
  }
  func.func @transform_2(%arg0: i32) -> i32 {
    %c0_i32 = arith.constant 0 : i32
    %c0_i32_0 = arith.constant 0 : i32
    return %c0_i32 : i32
  }
  func.func @transform_3(%arg0: i32) -> (i32, i32) {
    %c0_i32 = arith.constant 0 : i32
    %c0_i32_0 = arith.constant 0 : i32
    return %c0_i32, %arg0 : i32, i32
  }
}

</mosaic_0001>

<llo_original>
// kernel: tpu_custom_call.1
$region0: #{tpu_custom_call.1}
  #allocation0 [shape = 'u32[]', space=smem, size = 0x4, offset = 0x4, fixed_abs, tag = 'smem constant byte address 0x4 - core index']
  #allocation1 [shape = 'u32[144,128]{1,0:T(1,128)}', space=vmem, size = 0x12000, scoped, tag = 'internal scratch']
  #allocation2 [shape = 'f32[1]{0:T(128)S(6)}', space=smem, size = 0x200, scoped, tag = 'scoped memory for tpu_custom_call.1']
  %s0 = inlined_call_operand.hbm [shape: f32[8,256], index: 0, kind: input, shape index: {}]
  %s1 = inlined_call_operand.vmem [shape: f32[1,256], index: 1, kind: input, shape index: {}]
  %s2 = inlined_call_operand.<no memory space> [shape: f32[1], index: 2, kind: input, shape index: {}]
  %s3 = inlined_call_operand.hbm [shape: f32[1,8], index: 3, kind: output, shape index: {}]
  %s4 = sld [smem:[#allocation0]]
  $region26: #{tpu_custom_call.1} parent=0
    _
  %s6 = ssub.s32 1, %s4
  %s7 = scalar_select 0, %s6, %s4
  %8 = sst [smem:[#allocation2]] %s2
  $region1: #{tpu_custom_call.1} parent=0
    #allocation3 [shape = 'u8[8192]{0}', space=vmem, size = 0x2000, scoped, tag = 'input window, operand 0, single buffered']
    #allocation4 [shape = 's32[1]{0}', space=sflag, size = 0x4, scoped, tag = 'scoped memory for tpu_custom_call.1']
    #allocation5 [shape = 's32[1]{0}', space=sflag, size = 0x4, scoped, tag = 'scoped memory for tpu_custom_call.1']
    #allocation6 [shape = 'u8[512]{0}', space=vmem, size = 0x400, scoped, tag = 'output window, operand 0, single buffered']
    %9 = vsyncpa [#allocation4], 0
    %10 = vsyncpa [#allocation5], 0
    // Predicated region
    $region2: #{tpu_custom_call.1} parent=1 // pred_check
      _
    $region3: #{tpu_custom_call.1} parent=1 // pred_check_branch
      %12 = sbr.rel (0) target = $region5
    $region4: #{tpu_custom_call.1} parent=1 // pred_region
      %s14 = ssub.s32 256, 256
      %15 = vsyncadd [#allocation4], %s14
      %s17 = sshll.u32 [#allocation3], 4
      %s18 = int_to_ptr.vmem [resolvable:$true] %s17
      %20 = dma.hbm_to_vmem [thread:$0]  %s0, 256, %s18, [#allocation4]
    $region5: #{tpu_custom_call.1} parent=1 // pred_fallthru
      _
    // Predicated region
    $region6: #{tpu_custom_call.1} parent=1 // pred_check
      _
    $region7: #{tpu_custom_call.1} parent=1 // pred_check_branch
      %22 = sbr.rel (0) target = $region9
    $region8: #{tpu_custom_call.1} parent=1 // pred_region
      _
    $region9: #{tpu_custom_call.1} parent=1 // pred_fallthru
      _
    // Predicated region
    $region10: #{tpu_custom_call.1} parent=1 // pred_check
      _
    $region11: #{tpu_custom_call.1} parent=1 // pred_check_branch
      %24 = sbr.rel (0) target = $region13
    $region12: #{tpu_custom_call.1} parent=1 // pred_region
      _
    $region13: #{tpu_custom_call.1} parent=1 // pred_fallthru
      _
    // Predicated region
    $region14: #{tpu_custom_call.1} parent=1 // pred_check
      _
    $region15: #{tpu_custom_call.1} parent=1 // pred_check_branch
      %26 = sbr.rel (0) target = $region17
    $region16: #{tpu_custom_call.1} parent=1 // pred_region
      %27 = dma.done [#allocation4], 256
    $region17: #{tpu_custom_call.1} parent=1 // pred_fallthru
      _
    %v28 = vld [vmem:[%s1] sm:$0x3]
    %s29 = sld [smem:[#allocation2]]
    %v30 = vld [vmem:[#allocation3] sm:$0xff]
    %v31 = vld [vmem:[#allocation3 + $0x8] sm:$0xff]
    %v32 = vstv %s29
    %v34 = vlaneseq
    %v35 = vshrl.u32 %v34, 7
    %v36 = vsub.s32 0, %v35
    %v37 = vrot.slane %v28, %v36
    %v38 = vlaneseq
    %v39 = vshrl.u32 %v38, 7
    %v40 = vsub.s32 1, %v39
    %v41 = vrot.slane %v28, %v40
    %44 = vmatprep.subr.mxu0 0.0
    %45 = vmatpush1.xpose.msra.mxu0 0.0
    %46 = vmatprep.subr.mxu0 0.0
    %47 = vmatpush1.xpose.msra.mxu0 0.0
    %48 = vmatprep.subr.mxu0 0.0
    %49 = vmatpush1.xpose.msra.mxu0 0.0
    %50 = vmatprep.subr.mxu0 0.0
    %51 = vmatpush1.xpose.msra.mxu0 0.0
    %52 = vmatprep.subr.mxu0 0.0
    %53 = vmatpush1.xpose.msra.mxu0 0.0
    %54 = vmatprep.subr.mxu0 0.0
    %55 = vmatpush1.xpose.msra.mxu0 0.0
    %56 = vmatprep.subr.mxu0 0.0
    %57 = vmatpush1.xpose.msra.mxu0 0.0
    %58 = vmatprep.subr.mxu0 0.0
    %59 = vmatpush1.xpose.msra.mxu0 0.0
    %60 = vmatprep.subr.mxu0 0.0
    %61 = vmatpush1.xpose.msra.mxu0 0.0
    %62 = vmatprep.subr.mxu0 0.0
    %63 = vmatpush1.xpose.msra.mxu0 0.0
    %64 = vmatprep.subr.mxu0 0.0
    %65 = vmatpush1.xpose.msra.mxu0 0.0
    %66 = vmatprep.subr.mxu0 0.0
    %67 = vmatpush1.xpose.msra.mxu0 0.0
    %68 = vmatprep.subr.mxu0 0.0
    %69 = vmatpush1.xpose.msra.mxu0 0.0
    %70 = vmatprep.subr.mxu0 0.0
    %71 = vmatpush1.xpose.msra.mxu0 0.0
    %72 = vmatprep.subr.mxu0 0.0
    %73 = vmatpush1.xpose.msra.mxu0 0.0
    %74 = vmatprep.subr.mxu0 %v31
    %75 = vmatpush1.xpose.msra.mxu0 %v30
    %76 = vmatprep.subr.mxu0 0.0
    %77 = vmatpush2.xpose.msra.mxu0 0.0
    %78 = vmatprep.subr.mxu0 0.0
    %79 = vmatpush2.xpose.msra.mxu0 0.0
    %80 = vmatprep.subr.mxu0 0.0
    %81 = vmatpush2.xpose.msra.mxu0 0.0
    %82 = vmatprep.subr.mxu0 0.0
    %83 = vmatpush2.xpose.msra.mxu0 0.0
    %84 = vmatprep.subr.mxu0 0.0
    %85 = vmatpush2.xpose.msra.mxu0 0.0
    %86 = vmatprep.subr.mxu0 0.0
    %87 = vmatpush2.xpose.msra.mxu0 0.0
    %88 = vmatprep.subr.mxu0 0.0
    %89 = vmatpush2.xpose.msra.mxu0 0.0
    %90 = vmatprep.subr.mxu0 0.0
    %91 = vmatpush2.xpose.msra.mxu0 0.0
    %92 = vmatprep.subr.mxu0 0.0
    %93 = vmatpush2.xpose.msra.mxu0 0.0
    %94 = vmatprep.subr.mxu0 0.0
    %95 = vmatpush2.xpose.msra.mxu0 0.0
    %96 = vmatprep.subr.mxu0 0.0
    %97 = vmatpush2.xpose.msra.mxu0 0.0
    %98 = vmatprep.subr.mxu0 0.0
    %99 = vmatpush2.xpose.msra.mxu0 0.0
    %100 = vmatprep.subr.mxu0 0.0
    %101 = vmatpush2.xpose.msra.mxu0 0.0
    %102 = vmatprep.subr.mxu0 0.0
    %103 = vmatpush2.xpose.msra.mxu0 0.0
    %104 = vmatprep.subr.mxu0 0.0
    %105 = vmatpush2.xpose.msra.mxu0 0.0
    %106 = vmatprep.subr.mxu0 0.0
    %107 = vmatpush2.xpose.msra.mxu0 0.0
    %108 = vmatprep.mubr.f32.mxu0 %v41
    %109 = vmatmul.mubr.f32.gmra.mxu0 %v37
    %v110 = vpop.f32.mrf.mxu0
    %v111 = vadd.f32 %v32, %v110
    %v112 = vpop.f32.mrf.mxu0
    %113 = vdwg.mxu0
    %vm114 = vcmask 57344
    %115 = vst.msk [vmem:[#allocation6] sm:$0x1] %vm114, %v111
    // Predicated region
    $region18: #{tpu_custom_call.1} parent=1 // pred_check
      _
    $region19: #{tpu_custom_call.1} parent=1 // pred_check_branch
      %117 = sbr.rel (0) target = $region21
    $region20: #{tpu_custom_call.1} parent=1 // pred_region
      %s119 = ssub.s32 16, 16
      %120 = vsyncadd [#allocation5], %s119
      %s122 = sshll.u32 [#allocation6], 4
      %s123 = int_to_ptr.vmem [resolvable:$true] %s122
      %125 = dma.vmem_to_hbm [thread:$0]  %s123, 16, %s3, [#allocation5]
    $region21: #{tpu_custom_call.1} parent=1 // pred_fallthru
      _
    // Predicated region
    $region22: #{tpu_custom_call.1} parent=1 // pred_check
      _
    $region23: #{tpu_custom_call.1} parent=1 // pred_check_branch
      %127 = sbr.rel (0) target = $region25
    $region24: #{tpu_custom_call.1} parent=1 // pred_region
      %128 = dma.done [#allocation5], 16
    $region25: #{tpu_custom_call.1} parent=1 // pred_fallthru
      _
    %129 = vsyncpa [#allocation4], 1
    %130 = vsyncpa [#allocation5], 1

</llo_original>
